<compile_context>
chip_gen: v7x
topology: tpu7x:2x2x1
jax: 0.10.0
libtpu: 0.0.40
codegen_flags: <defaults>
</compile_context>

<pallas_src>
import functools
import math

import jax
import jax.numpy as jnp
from jax.experimental import pallas as pl
from jax.experimental.pallas import tpu as pltpu


_MIB = 1024 * 1024
_VMEM_BUDGET = 48 * _MIB   # conservative: leaves double-buffer headroom on v7x


# ---------------------------------------------------------------------------
# Kernels
# ---------------------------------------------------------------------------

def _ffn_kernel_resident(x_ref, w1_ref, b1_ref, w2_ref, b2_ref, o_ref):
    """Weight-resident fused FFN (no d_ff grid axis, no accumulator scratch).

    Block shapes:
      x_ref : (tm, d_model)        w1_ref: (d_model, d_ff)   b1_ref: (1, d_ff)
      w2_ref: (d_ff, d_model)      b2_ref: (1, d_model)      o_ref : (tm, d_model)
    """
    cdt = w1_ref.dtype                       # MXU operand dtype (bf16 or f32)
    x = x_ref[...].astype(cdt)               # single cast per M-tile
    h = jnp.dot(x, w1_ref[...], preferred_element_type=jnp.float32)
    h = jnp.maximum(h + b1_ref[...], 0.0)    # bias + ReLU in f32
    # TODO(synk): nn.Dropout is eval-mode identity here; a training-mode kernel
    #             would mask h via pltpu.prng_seed / pltpu.prng_random_bits.
    out = jnp.dot(h.astype(cdt), w2_ref[...], preferred_element_type=jnp.float32)
    o_ref[...] = (out + b2_ref[...]).astype(o_ref.dtype)


def _ffn_kernel_tiled(x_ref, w1_ref, b1_ref, w2_ref, b2_ref, o_ref, *scratch):
    """d_ff-tiled fused FFN with f32 accumulator scratch (fallback path).

    acc += ReLU(x @ W1[:, f] + b1[f]) @ W2[f, :];  o = acc + b2 at last f.
    Optional leading scratch holds x cast to the compute dtype (hoisted out of
    the f loop; the x block is constant across f).
    """
    acc_ref = scratch[-1]
    xc_ref = scratch[0] if len(scratch) == 2 else None
    cdt = w1_ref.dtype
    f = pl.program_id(1)

    @pl.when(f == 0)
    def _init():
        acc_ref[...] = jnp.zeros_like(acc_ref)
        if xc_ref is not None:
            xc_ref[...] = x_ref[...].astype(cdt)   # cast once per M-tile

    x = xc_ref[...] if xc_ref is not None else x_ref[...]
    h = jnp.dot(x, w1_ref[...], preferred_element_type=jnp.float32)
    h = jnp.maximum(h + b1_ref[...], 0.0)
    acc_ref[...] += jnp.dot(h.astype(cdt), w2_ref[...],
                            preferred_element_type=jnp.float32)

    @pl.when(f == pl.num_programs(1) - 1)
    def _finalize():
        o_ref[...] = (acc_ref[...] + b2_ref[...]).astype(o_ref.dtype)


# ---------------------------------------------------------------------------
# Tile selection / VMEM footprint model
# ---------------------------------------------------------------------------

def _pick_tile(dim, target, aligns):
    """Largest tile <= target that divides `dim` and is a multiple of one of
    `aligns` (tried in order); falls back to the full dim (always legal)."""
    if dim <= target:
        return dim
    for align in aligns:
        t = (min(target, dim) // align) * align
        while t >= align:
            if dim % t == 0:
                return t
            t -= align
    return dim


def _footprint_resident(tm, d_model, d_ff, x_item, w_item, o_item):
    weights = 2 * 2 * d_model * d_ff * w_item          # W1 + W2, double-buffered
    biases = 2 * (d_ff + d_model) * 4
    xio = 2 * tm * d_model * (x_item + o_item)         # x + out, double-buffered
    hidden = tm * d_ff * 4                             # f32 intermediate
    return weights + biases + xio + hidden


def _footprint_tiled(tm, tf, d_model, x_item, w_item, o_item):
    weights = 2 * 2 * d_model * tf * w_item            # W1/W2 column/row blocks
    biases = 2 * (tf + d_model) * 4
    xio = 2 * tm * d_model * (x_item + o_item)
    acc = tm * d_model * 4
    xc = tm * d_model * w_item if w_item != x_item else 0
    hidden = tm * tf * 4
    return weights + biases + xio + acc + xc + hidden


# ---------------------------------------------------------------------------
# pallas_call wrapper
# ---------------------------------------------------------------------------

def ffn_forward(x2d, w1, b1, w2, b2, *, block_m=None, block_f=None,
                out_dtype=None, force_tiled=False):
    """x2d: (M, d_model); W1: (d_model, d_ff); W2: (d_ff, d_model).
    MXU operand dtype == w1.dtype (bf16 recommended); accumulation is f32."""
    M, d_model = x2d.shape
    d_ff = w1.shape[1]
    compute_dtype = w1.dtype
    out_dtype = x2d.dtype if out_dtype is None else out_dtype

    x_item = jnp.dtype(x2d.dtype).itemsize
    w_item = jnp.dtype(compute_dtype).itemsize
    o_item = jnp.dtype(out_dtype).itemsize

    if block_m is None:
        block_m = 2048 if w_item == 2 else 1024
    target_m = block_m
    if M >= 256:
        target_m = min(target_m, M // 2)   # keep >= 2 M-steps (v7x megacore)
    aligns_m = (128, 16) if x_item == 2 else (128, 16, 8)
    tm = _pick_tile(M, target_m, aligns_m)

    b1 = b1.reshape(1, d_ff).astype(jnp.float32)
    b2 = b2.reshape(1, d_model).astype(jnp.float32)
    flops = 4 * M * d_model * d_ff          # two matmuls, 2*M*N*K each

    # ---------------- Path 1: weight-resident (no d_ff grid axis) ----------
    resident_tm = None
    if not force_tiled:
        cand = tm
        while True:
            if _footprint_resident(cand, d_model, d_ff,
                                   x_item, w_item, o_item) <= _VMEM_BUDGET:
                resident_tm = cand
                break
            smaller = _pick_tile(M, max(cand // 2, 8), aligns_m)
            if smaller >= cand:
                break
            cand = smaller

    if resident_tm is not None:
        tm = resident_tm
        grid = (M // tm,)
        footprint = _footprint_resident(tm, d_model, d_ff, x_item, w_item, o_item)
        bytes_accessed = (M * d_model * (x_item + o_item)
                          + (w1.size + w2.size) * w_item
                          + (b1.size + b2.size) * 4)
        vmem_limit = int(min(max(footprint * 1.25, 32 * _MIB), 64 * _MIB))
        return pl.pallas_call(
            _ffn_kernel_resident,
            out_shape=jax.ShapeDtypeStruct((M, d_model), out_dtype),
            grid_spec=pltpu.PrefetchScalarGridSpec(
                num_scalar_prefetch=0,
                grid=grid,
                in_specs=[
                    pl.BlockSpec((tm, d_model), lambda i: (i, 0)),      # x
                    pl.BlockSpec((d_model, d_ff), lambda i: (0, 0)),    # W1 (resident)
                    pl.BlockSpec((1, d_ff), lambda i: (0, 0)),          # b1
                    pl.BlockSpec((d_ff, d_model), lambda i: (0, 0)),    # W2 (resident)
                    pl.BlockSpec((1, d_model), lambda i: (0, 0)),       # b2
                ],
                out_specs=pl.BlockSpec((tm, d_model), lambda i: (i, 0)),
                scratch_shapes=[],
            ),
            compiler_params=pltpu.CompilerParams(
                dimension_semantics=("parallel",),
                vmem_limit_bytes=vmem_limit),
            cost_estimate=pl.CostEstimate(
                flops=flops, transcendentals=0,
                bytes_accessed=int(bytes_accessed)),
        )(x2d, w1, b1, w2, b2)

    # ---------------- Path 2: d_ff-tiled accumulator (fallback) ------------
    if block_f is None:
        block_f = 512
    tf = _pick_tile(d_ff, block_f, (256, 128))
    while _footprint_tiled(tm, tf, d_model, x_item, w_item, o_item) > _VMEM_BUDGET:
        if tf > 128:
            new_tf = _pick_tile(d_ff, max(tf // 2, 128), (256, 128))
            if new_tf < tf:
                tf = new_tf
                continue
        if tm > 8:
            new_tm = _pick_tile(M, max(tm // 2, 8), aligns_m)
            if new_tm < tm:
                tm = new_tm
                continue
        break

    grid = (M // tm, d_ff // tf)
    grid_i = grid[0]
    needs_cast = compute_dtype != x2d.dtype
    scratch = []
    if needs_cast:
        scratch.append(pltpu.VMEM((tm, d_model), compute_dtype))  # hoisted x cast
    scratch.append(pltpu.VMEM((tm, d_model), jnp.float32))         # f32 accumulator

    footprint = _footprint_tiled(tm, tf, d_model, x_item, w_item, o_item)
    # Honest HBM estimate: W1/W2/b1 are re-streamed once per M-tile.
    bytes_accessed = (M * d_model * (x_item + o_item)
                      + grid_i * (w1.size + w2.size) * w_item
                      + grid_i * b1.size * 4 + b2.size * 4)
    vmem_limit = int(min(max(footprint * 1.25, 32 * _MIB), 64 * _MIB))
    return pl.pallas_call(
        _ffn_kernel_tiled,
        out_shape=jax.ShapeDtypeStruct((M, d_model), out_dtype),
        grid_spec=pltpu.PrefetchScalarGridSpec(
            num_scalar_prefetch=0,
            grid=grid,
            in_specs=[
                pl.BlockSpec((tm, d_model), lambda i, f: (i, 0)),   # x (constant over f)
                pl.BlockSpec((d_model, tf), lambda i, f: (0, f)),   # W1 column block
                pl.BlockSpec((1, tf), lambda i, f: (0, f)),         # b1 block
                pl.BlockSpec((tf, d_model), lambda i, f: (f, 0)),   # W2 row block
                pl.BlockSpec((1, d_model), lambda i, f: (0, 0)),    # b2
            ],
            out_specs=pl.BlockSpec((tm, d_model), lambda i, f: (i, 0)),
            scratch_shapes=scratch,
        ),
        compiler_params=pltpu.CompilerParams(
            dimension_semantics=("parallel", "arbitrary"),
            vmem_limit_bytes=vmem_limit),
        cost_estimate=pl.CostEstimate(
            flops=flops, transcendentals=0, bytes_accessed=int(bytes_accessed)),
    )(x2d, w1, b1, w2, b2)


# ---------------------------------------------------------------------------
# Module wrapper (parameters + forward)
# ---------------------------------------------------------------------------

class PositionwiseFeedForwardPallas:
    """JAX/Pallas port of PositionwiseFeedForward (forward pass, eval mode).

    Weights stored in `param_dtype` (bf16 default: half the weight HBM traffic,
    native bf16 MXU with f32 accumulation).  Biases stay f32.  Output dtype
    follows the input dtype.
    """

    def __init__(self, d_model, d_ff, key, dropout=0.1,
                 param_dtype=jnp.bfloat16):
        self.d_model = d_model
        self.d_ff = d_ff
        self.param_dtype = param_dtype

        # nn.Linear default init: U(-1/sqrt(fan_in), 1/sqrt(fan_in)).
        # Weights stored as (in, out) so the kernel computes x @ W + b.
        k1, k2, k3, k4 = jax.random.split(key, 4)
        b1_bound = 1.0 / math.sqrt(d_model)
        b2_bound = 1.0 / math.sqrt(d_ff)
        self.w1 = jax.random.uniform(k1, (d_model, d_ff), minval=-b1_bound,
                                     maxval=b1_bound,
                                     dtype=jnp.float32).astype(param_dtype)
        self.b1 = jax.random.uniform(k2, (d_ff,), minval=-b1_bound,
                                     maxval=b1_bound, dtype=jnp.float32)
        self.w2 = jax.random.uniform(k3, (d_ff, d_model), minval=-b2_bound,
                                     maxval=b2_bound,
                                     dtype=jnp.float32).astype(param_dtype)
        self.b2 = jax.random.uniform(k4, (d_model,), minval=-b2_bound,
                                     maxval=b2_bound, dtype=jnp.float32)

    def __call__(self, x, block_m=None, block_f=None, force_tiled=False):
        lead = x.shape[:-1]
        x2d = x.reshape(-1, self.d_model)
        y = ffn_forward(x2d, self.w1, self.b1, self.w2, self.b2,
                        block_m=block_m, block_f=block_f,
                        out_dtype=x.dtype, force_tiled=force_tiled)
        return y.reshape(*lead, self.d_model)


# ---------------------------------------------------------------------------
# Pure-JAX reference
# ---------------------------------------------------------------------------

def reference_forward(ffn, x):
    w1 = ffn.w1.astype(jnp.float32)
    w2 = ffn.w2.astype(jnp.float32)
    h = jnp.maximum(x.astype(jnp.float32) @ w1 + ffn.b1, 0.0)
    return h @ w2 + ffn.b2


if __name__ == "__main__":
    B, S, d_model, d_ff = 2, 8, 32, 256

    root = jax.random.PRNGKey(0)
    k_param, k_x = jax.random.split(root)
    x = jax.random.normal(k_x, (B, S, d_model), dtype=jnp.float32)

    # f32 parameters -> exact-tolerance check; hits the weight-resident path.
    ffn_f32 = PositionwiseFeedForwardPallas(d_model, d_ff, k_param,
                                            param_dtype=jnp.float32)
    y = jax.block_until_ready(ffn_f32(x))
    y_ref = reference_forward(ffn_f32, x)
    assert y.shape == (B, S, d_model)
    assert jnp.allclose(y, y_ref, atol=1e-4, rtol=1e-4)

    # Force the d_ff-tiled accumulator path (grid=(2, 2)) to exercise
    # init / accumulate / finalize.
    y_tiled = jax.block_until_ready(ffn_f32(x, block_m=8, block_f=128,
                                            force_tiled=True))
    assert jnp.allclose(y_tiled, y_ref, atol=1e-4, rtol=1e-4)

    # Default bf16 weights / bf16 MXU operands / f32 accumulation (recommended
    # on v5e/v6e/v7x).  Loose tolerance is expected for bf16 operand rounding.
    ffn_bf16 = PositionwiseFeedForwardPallas(d_model, d_ff, k_param)
    y_bf16 = jax.block_until_ready(ffn_bf16(x))
    y_ref16 = reference_forward(ffn_bf16, x)
    assert y_bf16.dtype == x.dtype
    assert jnp.allclose(y_bf16, y_ref16, atol=1e-1, rtol=1e-1)

    # bf16 tiled path (x cast hoisted into a VMEM scratch at f == 0).
    y_bf16_t = jax.block_until_ready(ffn_bf16(x, block_m=8, block_f=128,
                                              force_tiled=True))
    assert jnp.allclose(y_bf16_t, y_ref16, atol=1e-1, rtol=1e-1)

    print("KERNEL_OK")
</pallas_src>

<mosaic_0001>
module attributes {stable_mosaic.version = 11 : i64} {
  func.func @_ffn_kernel_resident(%arg0: i32, %arg1: memref<16x32xf32, #tpu.memory_space<vmem>>, %arg2: memref<32x256xf32, #tpu.memory_space<vmem>>, %arg3: memref<1x256xf32, #tpu.memory_space<vmem>>, %arg4: memref<256x32xf32, #tpu.memory_space<vmem>>, %arg5: memref<1x32xf32, #tpu.memory_space<vmem>>, %arg6: memref<16x32xf32, #tpu.memory_space<vmem>>) attributes {dimension_semantics = [#tpu.dimension_semantics<parallel>], iteration_bounds = array<i64: 1>, scalar_prefetch = 0 : i64, scratch_operands = 0 : i64, tpu.core_type = #tpu.core_type<tc>, window_params = [{transform_indices = @transform_0, window_bounds = array<i64: 16, 32>}, {pipeline_mode = #tpu.pipeline_mode<synchronous>, transform_indices = @transform_1, window_bounds = array<i64: 32, 256>}, {pipeline_mode = #tpu.pipeline_mode<synchronous>, transform_indices = @transform_2, window_bounds = array<i64: 1, 256>}, {pipeline_mode = #tpu.pipeline_mode<synchronous>, transform_indices = @transform_3, window_bounds = array<i64: 256, 32>}, {pipeline_mode = #tpu.pipeline_mode<synchronous>, transform_indices = @transform_4, window_bounds = array<i64: 1, 32>}, {transform_indices = @transform_5, window_bounds = array<i64: 16, 32>}]} {
    %c0 = arith.constant 0 : index
    %c0_0 = arith.constant 0 : index
    %0 = vector.load %arg1[%c0, %c0_0] : memref<16x32xf32, #tpu.memory_space<vmem>>, vector<16x32xf32>
    %c0_1 = arith.constant 0 : index
    %c0_2 = arith.constant 0 : index
    %1 = vector.load %arg2[%c0_1, %c0_2] : memref<32x256xf32, #tpu.memory_space<vmem>>, vector<32x256xf32>
    %cst = arith.constant dense<0.000000e+00> : vector<16x256xf32>
    %2 = tpu.matmul %0, %1, %cst {dimension_numbers = #tpu.dot_dimension_numbers<[1], [0], [0], [1], [0, 0, 1, 1], [], []>} : vector<16x32xf32>, vector<32x256xf32>, vector<16x256xf32> -> vector<16x256xf32>
    %c0_3 = arith.constant 0 : index
    %c0_4 = arith.constant 0 : index
    %3 = vector.load %arg3[%c0_3, %c0_4] : memref<1x256xf32, #tpu.memory_space<vmem>>, vector<1x256xf32>
    %4 = vector.broadcast %3 : vector<1x256xf32> to vector<16x256xf32>
    %5 = arith.addf %2, %4 : vector<16x256xf32>
    %cst_5 = arith.constant 0.000000e+00 : f32
    %6 = vector.broadcast %cst_5 : f32 to vector<16x256xf32>
    %7 = arith.maximumf %5, %6 : vector<16x256xf32>
    %c0_6 = arith.constant 0 : index
    %c0_7 = arith.constant 0 : index
    %8 = vector.load %arg4[%c0_6, %c0_7] : memref<256x32xf32, #tpu.memory_space<vmem>>, vector<256x32xf32>
    %cst_8 = arith.constant dense<0.000000e+00> : vector<16x32xf32>
    %9 = tpu.matmul %7, %8, %cst_8 {dimension_numbers = #tpu.dot_dimension_numbers<[1], [0], [0], [1], [0, 0, 1, 1], [], []>} : vector<16x256xf32>, vector<256x32xf32>, vector<16x32xf32> -> vector<16x32xf32>
    %c0_9 = arith.constant 0 : index
    %c0_10 = arith.constant 0 : index
    %10 = vector.load %arg5[%c0_9, %c0_10] : memref<1x32xf32, #tpu.memory_space<vmem>>, vector<1x32xf32>
    %11 = vector.broadcast %10 : vector<1x32xf32> to vector<16x32xf32>
    %12 = arith.addf %9, %11 : vector<16x32xf32>
    %c0_11 = arith.constant 0 : index
    %c0_12 = arith.constant 0 : index
    %13 = vector.load %arg6[%c0_11, %c0_12] : memref<16x32xf32, #tpu.memory_space<vmem>>, vector<16x32xf32>
    tpu.vector_store %arg6[%c0_11, %c0_12], %12 {strides = array<i32>} : memref<16x32xf32, #tpu.memory_space<vmem>>, vector<16x32xf32>,
    return
  }
  func.func @transform_0(%arg0: i32) -> (i32, i32) {
    %c0_i32 = arith.constant 0 : i32
    %c0_i32_0 = arith.constant 0 : i32
    return %arg0, %c0_i32 : i32, i32
  }
  func.func @transform_1(%arg0: i32) -> (i32, i32) {
    %c0_i32 = arith.constant 0 : i32
    %c0_i32_0 = arith.constant 0 : i32
    %c0_i32_1 = arith.constant 0 : i32
    return %c0_i32, %c0_i32_0 : i32, i32
  }
  func.func @transform_2(%arg0: i32) -> (i32, i32) {
    %c0_i32 = arith.constant 0 : i32
    %c0_i32_0 = arith.constant 0 : i32
    %c0_i32_1 = arith.constant 0 : i32
    return %c0_i32, %c0_i32_0 : i32, i32
  }
  func.func @transform_3(%arg0: i32) -> (i32, i32) {
    %c0_i32 = arith.constant 0 : i32
    %c0_i32_0 = arith.constant 0 : i32
    %c0_i32_1 = arith.constant 0 : i32
    return %c0_i32, %c0_i32_0 : i32, i32
  }
  func.func @transform_4(%arg0: i32) -> (i32, i32) {
    %c0_i32 = arith.constant 0 : i32
    %c0_i32_0 = arith.constant 0 : i32
    %c0_i32_1 = arith.constant 0 : i32
    return %c0_i32, %c0_i32_0 : i32, i32
  }
  func.func @transform_5(%arg0: i32) -> (i32, i32) {
    %c0_i32 = arith.constant 0 : i32
    %c0_i32_0 = arith.constant 0 : i32
    return %arg0, %c0_i32 : i32, i32
  }
}

</mosaic_0001>

<llo_original>
// kernel: tpu_custom_call.1
$region0: #{tpu_custom_call.1}
  #allocation0 [shape = 'u32[]', space=smem, size = 0x4, offset = 0x4, fixed_abs, tag = 'smem constant byte address 0x4 - core index']
  #allocation1 [shape = 'u32[144,128]{1,0:T(1,128)}', space=vmem, size = 0x12000, scoped, tag = 'internal scratch']
  %s0 = inlined_call_operand.vmem [shape: f32[16,32], index: 0, kind: input, shape index: {}]
  %s1 = inlined_call_operand.vmem [shape: f32[32,256], index: 1, kind: input, shape index: {}]
  %s2 = inlined_call_operand.vmem [shape: f32[1,256], index: 2, kind: input, shape index: {}]
  %s3 = inlined_call_operand.vmem [shape: f32[256,32], index: 3, kind: input, shape index: {}]
  %s4 = inlined_call_operand.vmem [shape: f32[1,32], index: 4, kind: input, shape index: {}]
  %s5 = inlined_call_operand.hbm [shape: f32[16,32], index: 5, kind: output, shape index: {}]
  %s6 = sld [smem:[#allocation0]]
  $region30: #{tpu_custom_call.1} parent=0
    _
  %s8 = ssub.s32 1, %s6
  %s9 = scalar_select 0, %s8, %s6
  $region1: #{tpu_custom_call.1} parent=0
    #allocation2 [shape = 'u8[8192]{0}', space=vmem, size = 0x2000, scoped, tag = 'output window, operand 0, single buffered']
    #allocation3 [shape = 's32[1]{0}', space=sflag, size = 0x4, scoped, tag = 'scoped memory for tpu_custom_call.1']
    %10 = vsyncpa [#allocation3], 0
    // Predicated region
    $region2: #{tpu_custom_call.1} parent=1 // pred_check
      _
    $region3: #{tpu_custom_call.1} parent=1 // pred_check_branch
      %12 = sbr.rel (0) target = $region5
    $region4: #{tpu_custom_call.1} parent=1 // pred_region
      _
    $region5: #{tpu_custom_call.1} parent=1 // pred_fallthru
      _
    // Predicated region
    $region6: #{tpu_custom_call.1} parent=1 // pred_check
      _
    $region7: #{tpu_custom_call.1} parent=1 // pred_check_branch
      %14 = sbr.rel (0) target = $region9
    $region8: #{tpu_custom_call.1} parent=1 // pred_region
      _
    $region9: #{tpu_custom_call.1} parent=1 // pred_fallthru
      _
    // Predicated region
    $region10: #{tpu_custom_call.1} parent=1 // pred_check
      _
    $region11: #{tpu_custom_call.1} parent=1 // pred_check_branch
      %16 = sbr.rel (0) target = $region13
    $region12: #{tpu_custom_call.1} parent=1 // pred_region
      _
    $region13: #{tpu_custom_call.1} parent=1 // pred_fallthru
      _
    // Predicated region
    $region14: #{tpu_custom_call.1} parent=1 // pred_check
      _
    $region15: #{tpu_custom_call.1} parent=1 // pred_check_branch
      %18 = sbr.rel (0) target = $region17
    $region16: #{tpu_custom_call.1} parent=1 // pred_region
      _
    $region17: #{tpu_custom_call.1} parent=1 // pred_fallthru
      _
    // Predicated region
    $region18: #{tpu_custom_call.1} parent=1 // pred_check
      _
    $region19: #{tpu_custom_call.1} parent=1 // pred_check_branch
      %20 = sbr.rel (0) target = $region21
    $region20: #{tpu_custom_call.1} parent=1 // pred_region
      _
    $region21: #{tpu_custom_call.1} parent=1 // pred_fallthru
      _
    %v21 = vld [vmem:[%s0] sm:$0xff]
    %v22 = vld [vmem:[%s0 + $0x8] sm:$0xff]
    %v23 = vld [vmem:[%s1] sm:$0xff]
    %v24 = vld [vmem:[%s1 + $0x8] sm:$0xff]
    %v25 = vld [vmem:[%s1 + $0x10] sm:$0xff]
    %v26 = vld [vmem:[%s1 + $0x18] sm:$0xff]
    %v27 = vld [vmem:[%s1 + $0x20] sm:$0xff]
    %v28 = vld [vmem:[%s1 + $0x28] sm:$0xff]
    %v29 = vld [vmem:[%s1 + $0x30] sm:$0xff]
    %v30 = vld [vmem:[%s1 + $0x38] sm:$0xff]
    %v31 = vld [vmem:[%s2] sm:$0x3]
    %v33 = vlaneseq
    %v34 = vshrl.u32 %v33, 7
    %v35 = vsub.s32 0, %v34
    %v36 = vrot.slane %v31, %v35
    %v37 = vlaneseq
    %v38 = vshrl.u32 %v37, 7
    %v39 = vsub.s32 1, %v38
    %v40 = vrot.slane %v31, %v39
    %vm43 = vcmask 261120
    %v45 = vsel %vm43, %v21, 0
    %v48 = vsel %vm43, %v22, 0
    %50 = vmatprep.subr.mxu0 %v24
    %51 = vmatpush1.msra.mxu0 %v23
    %52 = vmatprep.subr.mxu0 %v26
    %53 = vmatpush1.msra.mxu0 %v25
    %54 = vmatprep.subr.mxu0 %v28
    %55 = vmatpush1.msra.mxu0 %v27
    %56 = vmatprep.subr.mxu0 %v30
    %57 = vmatpush1.msra.mxu0 %v29
    %58 = vmatprep.subr.mxu0 0.0
    %59 = vmatpush1.msra.mxu0 0.0
    %60 = vmatprep.subr.mxu0 0.0
    %61 = vmatpush1.msra.mxu0 0.0
    %62 = vmatprep.subr.mxu0 0.0
    %63 = vmatpush1.msra.mxu0 0.0
    %64 = vmatprep.subr.mxu0 0.0
    %65 = vmatpush1.msra.mxu0 0.0
    %66 = vmatprep.subr.mxu0 0.0
    %67 = vmatpush1.msra.mxu0 0.0
    %68 = vmatprep.subr.mxu0 0.0
    %69 = vmatpush1.msra.mxu0 0.0
    %70 = vmatprep.subr.mxu0 0.0
    %71 = vmatpush1.msra.mxu0 0.0
    %72 = vmatprep.subr.mxu0 0.0
    %73 = vmatpush1.msra.mxu0 0.0
    %74 = vmatprep.subr.mxu0 0.0
    %75 = vmatpush1.msra.mxu0 0.0
    %76 = vmatprep.subr.mxu0 0.0
    %77 = vmatpush1.msra.mxu0 0.0
    %78 = vmatprep.subr.mxu0 0.0
    %79 = vmatpush1.msra.mxu0 0.0
    %80 = vmatprep.subr.mxu0 0.0
    %81 = vmatpush1.msra.mxu0 0.0
    %82 = vmatprep.subr.mxu0 0.0
    %83 = vmatpush1.msra.mxu0 0.0
    %84 = vmatprep.subr.mxu0 0.0
    %85 = vmatpush1.msra.mxu0 0.0
    %86 = vmatprep.subr.mxu0 0.0
    %87 = vmatpush1.msra.mxu0 0.0
    %88 = vmatprep.subr.mxu0 0.0
    %89 = vmatpush1.msra.mxu0 0.0
    %90 = vmatprep.subr.mxu0 0.0
    %91 = vmatpush1.msra.mxu0 0.0
    %92 = vmatprep.subr.mxu0 0.0
    %93 = vmatpush1.msra.mxu0 0.0
    %94 = vmatprep.subr.mxu0 0.0
    %95 = vmatpush1.msra.mxu0 0.0
    %96 = vmatprep.subr.mxu0 0.0
    %97 = vmatpush1.msra.mxu0 0.0
    %98 = vmatprep.subr.mxu0 0.0
    %99 = vmatpush1.msra.mxu0 0.0
    %100 = vmatprep.subr.mxu0 0.0
    %101 = vmatpush1.msra.mxu0 0.0
    %102 = vmatprep.subr.mxu0 0.0
    %103 = vmatpush1.msra.mxu0 0.0
    %104 = vmatprep.subr.mxu0 0.0
    %105 = vmatpush1.msra.mxu0 0.0
    %106 = vmatprep.subr.mxu0 0.0
    %107 = vmatpush1.msra.mxu0 0.0
    %108 = vmatprep.subr.mxu0 0.0
    %109 = vmatpush1.msra.mxu0 0.0
    %110 = vmatprep.subr.mxu0 0.0
    %111 = vmatpush1.msra.mxu0 0.0
    %112 = vmatprep.subr.mxu0 0.0
    %113 = vmatpush1.msra.mxu0 0.0
    %114 = vmatprep.mubr.f32.mxu0 0.0
    %115 = vmatmul.mubr.f32.gmra.mrb[0].mxu0 %v45
    %v116 = vpop.f32.mrb[0].mxu0
    %v117 = vadd.f32 %v36, %v116
    %v118 = vpop.f32.mrb[0].mxu0
    %v119 = vadd.f32 %v40, %v118
    %120 = vmatprep.mubr.f32.mxu0 0.0
    %121 = vmatmul.mubr.f32.gmra.mrb[0].mxu0 %v48
    %v122 = vpop.f32.mrb[0].mxu0
    %v123 = vadd.f32 %v36, %v122
    %v124 = vpop.f32.mrb[0].mxu0
    %v125 = vadd.f32 %v40, %v124
    %126 = vdwg.mxu0
    %v127 = vmax.f32 %v117, 0.0
    %v128 = vmax.f32 %v119, 0.0
    %v129 = vmax.f32 %v123, 0.0
    %v130 = vmax.f32 %v125, 0.0
    %v131 = vld [vmem:[%s3] sm:$0xff]
    %v132 = vld [vmem:[%s3 + $0x8] sm:$0xff]
    %v133 = vld [vmem:[%s3 + $0x10] sm:$0xff]
    %v134 = vld [vmem:[%s3 + $0x18] sm:$0xff]
    %v135 = vld [vmem:[%s3 + $0x20] sm:$0xff]
    %v136 = vld [vmem:[%s3 + $0x28] sm:$0xff]
    %v137 = vld [vmem:[%s3 + $0x30] sm:$0xff]
    %v138 = vld [vmem:[%s3 + $0x38] sm:$0xff]
    %v139 = vld [vmem:[%s3 + $0x40] sm:$0xff]
    %v140 = vld [vmem:[%s3 + $0x48] sm:$0xff]
    %v141 = vld [vmem:[%s3 + $0x50] sm:$0xff]
    %v142 = vld [vmem:[%s3 + $0x58] sm:$0xff]
    %v143 = vld [vmem:[%s3 + $0x60] sm:$0xff]
    %v144 = vld [vmem:[%s3 + $0x68] sm:$0xff]
    %v145 = vld [vmem:[%s3 + $0x70] sm:$0xff]
    %v146 = vld [vmem:[%s3 + $0x78] sm:$0xff]
    %v147 = vld [vmem:[%s3 + $0x80] sm:$0xff]
    %v148 = vld [vmem:[%s3 + $0x88] sm:$0xff]
    %v149 = vld [vmem:[%s3 + $0x90] sm:$0xff]
    %v150 = vld [vmem:[%s3 + $0x98] sm:$0xff]
    %v151 = vld [vmem:[%s3 + $0xa0] sm:$0xff]
    %v152 = vld [vmem:[%s3 + $0xa8] sm:$0xff]
    %v153 = vld [vmem:[%s3 + $0xb0] sm:$0xff]
    %v154 = vld [vmem:[%s3 + $0xb8] sm:$0xff]
    %v155 = vld [vmem:[%s3 + $0xc0] sm:$0xff]
    %v156 = vld [vmem:[%s3 + $0xc8] sm:$0xff]
    %v157 = vld [vmem:[%s3 + $0xd0] sm:$0xff]
    %v158 = vld [vmem:[%s3 + $0xd8] sm:$0xff]
    %v159 = vld [vmem:[%s3 + $0xe0] sm:$0xff]
    %v160 = vld [vmem:[%s3 + $0xe8] sm:$0xff]
    %v161 = vld [vmem:[%s3 + $0xf0] sm:$0xff]
    %v162 = vld [vmem:[%s3 + $0xf8] sm:$0xff]
    %v163 = vld [vmem:[%s4] sm:$0x1]
    %v165 = vlaneseq
    %v166 = vshrl.u32 %v165, 7
    %v167 = vsub.s32 0, %v166
    %v168 = vrot.slane %v163, %v167
    %170 = vmatprep.subr.mxu0 0.0
    %171 = vmatpush1.msra.mxu0 %v131
    %172 = vmatprep.subr.mxu0 0.0
    %173 = vmatpush1.msra.mxu0 %v132
    %174 = vmatprep.subr.mxu0 0.0
    %175 = vmatpush1.msra.mxu0 %v133
    %176 = vmatprep.subr.mxu0 0.0
    %177 = vmatpush1.msra.mxu0 %v134
    %178 = vmatprep.subr.mxu0 0.0
    %179 = vmatpush1.msra.mxu0 %v135
    %180 = vmatprep.subr.mxu0 0.0
    %181 = vmatpush1.msra.mxu0 %v136
    %182 = vmatprep.subr.mxu0 0.0
    %183 = vmatpush1.msra.mxu0 %v137
    %184 = vmatprep.subr.mxu0 0.0
    %185 = vmatpush1.msra.mxu0 %v138
    %186 = vmatprep.subr.mxu0 0.0
    %187 = vmatpush1.msra.mxu0 %v139
    %188 = vmatprep.subr.mxu0 0.0
    %189 = vmatpush1.msra.mxu0 %v140
    %190 = vmatprep.subr.mxu0 0.0
    %191 = vmatpush1.msra.mxu0 %v141
    %192 = vmatprep.subr.mxu0 0.0
    %193 = vmatpush1.msra.mxu0 %v142
    %194 = vmatprep.subr.mxu0 0.0
    %195 = vmatpush1.msra.mxu0 %v143
    %196 = vmatprep.subr.mxu0 0.0
    %197 = vmatpush1.msra.mxu0 %v144
    %198 = vmatprep.subr.mxu0 0.0
    %199 = vmatpush1.msra.mxu0 %v145
    %200 = vmatprep.subr.mxu0 0.0
    %201 = vmatpush1.msra.mxu0 %v146
    %202 = vmatprep.subr.mxu0 0.0
    %203 = vmatpush1.msra.mxu0 %v147
    %204 = vmatprep.subr.mxu0 0.0
    %205 = vmatpush1.msra.mxu0 %v148
    %206 = vmatprep.subr.mxu0 0.0
    %207 = vmatpush1.msra.mxu0 %v149
    %208 = vmatprep.subr.mxu0 0.0
    %209 = vmatpush1.msra.mxu0 %v150
    %210 = vmatprep.subr.mxu0 0.0
    %211 = vmatpush1.msra.mxu0 %v151
    %212 = vmatprep.subr.mxu0 0.0
    %213 = vmatpush1.msra.mxu0 %v152
    %214 = vmatprep.subr.mxu0 0.0
    %215 = vmatpush1.msra.mxu0 %v153
    %216 = vmatprep.subr.mxu0 0.0
    %217 = vmatpush1.msra.mxu0 %v154
    %218 = vmatprep.subr.mxu0 0.0
    %219 = vmatpush1.msra.mxu0 %v155
    %220 = vmatprep.subr.mxu0 0.0
    %221 = vmatpush1.msra.mxu0 %v156
    %222 = vmatprep.subr.mxu0 0.0
    %223 = vmatpush1.msra.mxu0 %v157
    %224 = vmatprep.subr.mxu0 0.0
    %225 = vmatpush1.msra.mxu0 %v158
    %226 = vmatprep.subr.mxu0 0.0
    %227 = vmatpush1.msra.mxu0 %v159
    %228 = vmatprep.subr.mxu0 0.0
    %229 = vmatpush1.msra.mxu0 %v160
    %230 = vmatprep.subr.mxu0 0.0
    %231 = vmatpush1.msra.mxu0 %v161
    %232 = vmatprep.subr.mxu0 0.0
    %233 = vmatpush1.msra.mxu0 %v162
    %234 = vmatprep.mubr.f32.mxu0 %v128
    %235 = vmatmul.mubr.f32.gmra.mrb[0].mxu0 %v127
    %v236 = vpop.f32.mrb[0].mxu0
    %v237 = vadd.f32 %v168, %v236
    %v238 = vpop.f32.mrb[0].mxu0
    %239 = vmatprep.mubr.f32.mxu0 %v130
    %240 = vmatmul.mubr.f32.gmra.mrb[0].mxu0 %v129
    %v241 = vpop.f32.mrb[0].mxu0
    %v242 = vadd.f32 %v168, %v241
    %v243 = vpop.f32.mrb[0].mxu0
    %244 = vdwg.mxu0
    %245 = vst.msk [vmem:[#allocation2] sm:$0xff] %vm43, %v237
    %246 = vst.msk [vmem:[#allocation2 + $0x8] sm:$0xff] %vm43, %v242
    // Predicated region
    $region22: #{tpu_custom_call.1} parent=1 // pred_check
      _
    $region23: #{tpu_custom_call.1} parent=1 // pred_check_branch
      %248 = sbr.rel (0) target = $region25
    $region24: #{tpu_custom_call.1} parent=1 // pred_region
      %s250 = ssub.s32 256, 256
      %251 = vsyncadd [#allocation3], %s250
      %s252 = sshll.u32 [#allocation2], 4
      %s253 = int_to_ptr.vmem [resolvable:$true] %s252
      %258 = dma.vmem_to_hbm [thread:$0]  %s253, 256, %s5, [#allocation3], 128, 128, 8
    $region25: #{tpu_custom_call.1} parent=1 // pred_fallthru
      _
    // Predicated region
    $region26: #{tpu_custom_call.1} parent=1 // pred_check
      _
    $region27: #{tpu_custom_call.1} parent=1 // pred_check_branch
      %260 = sbr.rel (0) target = $region29
    $region28: #{tpu_custom_call.1} parent=1 // pred_region
      %261 = dma.done [#allocation3], 256
    $region29: #{tpu_custom_call.1} parent=1 // pred_fallthru
      _
    %262 = vsyncpa [#allocation3], 1

</llo_original>
